<compile_context>
chip_gen: v7x
topology: tpu7x:2x2x1
jax: 0.10.0
libtpu: 0.0.40
codegen_flags: <defaults>
</compile_context>

<pallas_src>
import jax
import jax.numpy as jnp
from jax.experimental import pallas as pl
from jax.experimental.pallas import tpu as pltpu

HIDDEN = 64
TB_DEFAULT = 8192  # batch tile (rows); multiple of 8


def _round_up(n, m):
    return ((n + m - 1) // m) * m


def _maybe_concat_dict(t):
    """Mirror the module's dict handling: concat values by sorted key."""
    if isinstance(t, dict):
        return jnp.concatenate([t[k] for k in sorted(t.keys())], axis=-1)
    return t


def _mlp_kernel(xg_ref, w1_ref, b1_ref, w2_ref, b2_ref, w3_ref, b3_ref,
                w4_ref, b4_ref, o_ref):
    h = jnp.dot(xg_ref[...], w1_ref[...],
                preferred_element_type=jnp.float32) + b1_ref[...]
    h = jnp.maximum(h, 0.0)
    h = jnp.dot(h, w2_ref[...],
                preferred_element_type=jnp.float32) + b2_ref[...]
    h = jnp.maximum(h, 0.0)
    h = jnp.dot(h, w3_ref[...],
                preferred_element_type=jnp.float32) + b3_ref[...]
    h = jnp.maximum(h, 0.0)
    y = jnp.dot(h, w4_ref[...],
                preferred_element_type=jnp.float32) + b4_ref[...]
    o_ref[...] = y.astype(o_ref.dtype)


def mlp_conditioned_forward(x, goal, params, *, tb=None):
    """x: (B, input_dim) f32 (or dict), goal: (B, goal_dim) f32 / dict / None.

    params["w1".."w4"]: (in_features, out_features) == PyTorch weight.T
    params["b1".."b4"]: (1, out_features)
    """
    x = _maybe_concat_dict(x)
    goal_conditioned = goal is not None and (
        isinstance(goal, dict) or goal.shape[-1] > 0)
    if goal_conditioned:
        goal = _maybe_concat_dict(goal)
        xg = jnp.concatenate([x, goal], axis=-1)
    else:
        xg = x

    B, in_total = xg.shape
    out_dim = params["w4"].shape[1]

    # ---- batch tiling -------------------------------------------------------
    b8 = _round_up(max(B, 1), 8)
    if tb is None:
        if b8 <= 8:
            tb = b8
        else:
            # >=2 grid steps whenever possible (v7x megacore), capped at TB_DEFAULT.
            tb = min(TB_DEFAULT, _round_up(pl.cdiv(b8, 2), 8))
    else:
        tb = min(_round_up(int(tb), 8), b8)

    b_pad = _round_up(B, tb)
    if b_pad != B:
        xg = jnp.pad(xg, ((0, b_pad - B), (0, 0)))

    grid = (b_pad // tb,)

    def resident(arr):
        # Full block + constant index_map -> one DMA, resident across the grid.
        return pl.BlockSpec(arr.shape, lambda i: (0, 0))

    out = pl.pallas_call(
        _mlp_kernel,
        out_shape=jax.ShapeDtypeStruct((b_pad, out_dim), xg.dtype),
        grid=grid,
        in_specs=[
            pl.BlockSpec((tb, in_total), lambda i: (i, 0)),   # streamed xg tile
            resident(params["w1"]), resident(params["b1"]),
            resident(params["w2"]), resident(params["b2"]),
            resident(params["w3"]), resident(params["b3"]),
            resident(params["w4"]), resident(params["b4"]),
        ],
        out_specs=pl.BlockSpec((tb, out_dim), lambda i: (i, 0)),
        compiler_params=pltpu.CompilerParams(
            dimension_semantics=("parallel",),
            vmem_limit_bytes=32 << 20),
    )(xg,
      params["w1"], params["b1"],
      params["w2"], params["b2"],
      params["w3"], params["b3"],
      params["w4"], params["b4"])

    return out[:B]


def init_params(key, input_dim, goal_dim, output_dim):
    """Deterministic synthetic init (PyTorch-like uniform fan-in scaling)."""
    dims = [(input_dim + goal_dim, HIDDEN),
            (HIDDEN, HIDDEN),
            (HIDDEN, HIDDEN),
            (HIDDEN, output_dim)]
    params = {}
    for i, (fan_in, fan_out) in enumerate(dims, start=1):
        key, kw, kb = jax.random.split(key, 3)
        bound = 1.0 / jnp.sqrt(jnp.float32(fan_in))
        params[f"w{i}"] = jax.random.uniform(
            kw, (fan_in, fan_out), jnp.float32, -bound, bound)
        params[f"b{i}"] = jax.random.uniform(
            kb, (1, fan_out), jnp.float32, -bound, bound)
    return params


def _reference_forward(x, goal, params):
    """Pure-JAX reference matching the PyTorch module."""
    x = _maybe_concat_dict(x)
    if goal is not None and goal.shape[-1] > 0:
        x = jnp.concatenate([x, _maybe_concat_dict(goal)], axis=-1)
    h = jnp.maximum(x @ params["w1"] + params["b1"], 0.0)
    h = jnp.maximum(h @ params["w2"] + params["b2"], 0.0)
    h = jnp.maximum(h @ params["w3"] + params["b3"], 0.0)
    return h @ params["w4"] + params["b4"]


if __name__ == "__main__":
    input_dim, goal_dim, output_dim = 12, 4, 7

    key = jax.random.PRNGKey(0)
    key, kx, kg = jax.random.split(key, 3)
    params = init_params(key, input_dim, goal_dim, output_dim)

    # Small shape consistent with the module's forward (single tile).
    batch = 8
    x = jax.random.normal(kx, (batch, input_dim), jnp.float32)
    goal = jax.random.normal(kg, (batch, goal_dim), jnp.float32)

    out = jax.block_until_ready(mlp_conditioned_forward(x, goal, params))
    ref = _reference_forward(x, goal, params)
    assert out.shape == (batch, output_dim)
    assert jnp.allclose(out, ref, atol=1e-4, rtol=1e-4)

    # Multi-tile + ragged-batch path (exercises batch padding and the grid).
    batch2 = 50
    key, kx2, kg2 = jax.random.split(key, 3)
    x2 = jax.random.normal(kx2, (batch2, input_dim), jnp.float32)
    goal2 = jax.random.normal(kg2, (batch2, goal_dim), jnp.float32)
    out2 = jax.block_until_ready(
        mlp_conditioned_forward(x2, goal2, params, tb=16))
    ref2 = _reference_forward(x2, goal2, params)
    assert out2.shape == (batch2, output_dim)
    assert jnp.allclose(out2, ref2, atol=1e-4, rtol=1e-4)

    # Non-goal-conditioned path (goal_dim == 0): no goal operand at all.
    key, kp0, kx3 = jax.random.split(key, 3)
    params0 = init_params(kp0, input_dim, 0, output_dim)
    x3 = jax.random.normal(kx3, (batch, input_dim), jnp.float32)
    out3 = jax.block_until_ready(mlp_conditioned_forward(x3, None, params0))
    ref3 = _reference_forward(x3, None, params0)
    assert out3.shape == (batch, output_dim)
    assert jnp.allclose(out3, ref3, atol=1e-4, rtol=1e-4)

    print("KERNEL_OK")
</pallas_src>

<mosaic_0001>
module attributes {stable_mosaic.version = 11 : i64} {
  func.func @_mlp_kernel(%arg0: i32, %arg1: memref<8x16xf32, #tpu.memory_space<vmem>>, %arg2: memref<16x64xf32, #tpu.memory_space<vmem>>, %arg3: memref<1x64xf32, #tpu.memory_space<vmem>>, %arg4: memref<64x64xf32, #tpu.memory_space<vmem>>, %arg5: memref<1x64xf32, #tpu.memory_space<vmem>>, %arg6: memref<64x64xf32, #tpu.memory_space<vmem>>, %arg7: memref<1x64xf32, #tpu.memory_space<vmem>>, %arg8: memref<64x7xf32, #tpu.memory_space<vmem>>, %arg9: memref<1x7xf32, #tpu.memory_space<vmem>>, %arg10: memref<8x7xf32, #tpu.memory_space<vmem>>) attributes {dimension_semantics = [#tpu.dimension_semantics<parallel>], iteration_bounds = array<i64: 1>, scalar_prefetch = 0 : i64, scratch_operands = 0 : i64, tpu.core_type = #tpu.core_type<tc>, window_params = [{transform_indices = @transform_0, window_bounds = array<i64: 8, 16>}, {pipeline_mode = #tpu.pipeline_mode<synchronous>, transform_indices = @transform_1, window_bounds = array<i64: 16, 64>}, {pipeline_mode = #tpu.pipeline_mode<synchronous>, transform_indices = @transform_2, window_bounds = array<i64: 1, 64>}, {pipeline_mode = #tpu.pipeline_mode<synchronous>, transform_indices = @transform_3, window_bounds = array<i64: 64, 64>}, {pipeline_mode = #tpu.pipeline_mode<synchronous>, transform_indices = @transform_4, window_bounds = array<i64: 1, 64>}, {pipeline_mode = #tpu.pipeline_mode<synchronous>, transform_indices = @transform_5, window_bounds = array<i64: 64, 64>}, {pipeline_mode = #tpu.pipeline_mode<synchronous>, transform_indices = @transform_6, window_bounds = array<i64: 1, 64>}, {pipeline_mode = #tpu.pipeline_mode<synchronous>, transform_indices = @transform_7, window_bounds = array<i64: 64, 7>}, {pipeline_mode = #tpu.pipeline_mode<synchronous>, transform_indices = @transform_8, window_bounds = array<i64: 1, 7>}, {transform_indices = @transform_9, window_bounds = array<i64: 8, 7>}]} {
    %c0 = arith.constant 0 : index
    %c0_0 = arith.constant 0 : index
    %0 = vector.load %arg1[%c0, %c0_0] : memref<8x16xf32, #tpu.memory_space<vmem>>, vector<8x16xf32>
    %c0_1 = arith.constant 0 : index
    %c0_2 = arith.constant 0 : index
    %1 = vector.load %arg2[%c0_1, %c0_2] : memref<16x64xf32, #tpu.memory_space<vmem>>, vector<16x64xf32>
    %cst = arith.constant dense<0.000000e+00> : vector<8x64xf32>
    %2 = tpu.matmul %0, %1, %cst {dimension_numbers = #tpu.dot_dimension_numbers<[1], [0], [0], [1], [0, 0, 1, 1], [], []>} : vector<8x16xf32>, vector<16x64xf32>, vector<8x64xf32> -> vector<8x64xf32>
    %c0_3 = arith.constant 0 : index
    %c0_4 = arith.constant 0 : index
    %3 = vector.load %arg3[%c0_3, %c0_4] : memref<1x64xf32, #tpu.memory_space<vmem>>, vector<1x64xf32>
    %4 = vector.broadcast %3 : vector<1x64xf32> to vector<8x64xf32>
    %5 = arith.addf %2, %4 : vector<8x64xf32>
    %cst_5 = arith.constant 0.000000e+00 : f32
    %6 = vector.broadcast %cst_5 : f32 to vector<8x64xf32>
    %7 = arith.maximumf %5, %6 : vector<8x64xf32>
    %c0_6 = arith.constant 0 : index
    %c0_7 = arith.constant 0 : index
    %8 = vector.load %arg4[%c0_6, %c0_7] : memref<64x64xf32, #tpu.memory_space<vmem>>, vector<64x64xf32>
    %cst_8 = arith.constant dense<0.000000e+00> : vector<8x64xf32>
    %9 = tpu.matmul %7, %8, %cst_8 {dimension_numbers = #tpu.dot_dimension_numbers<[1], [0], [0], [1], [0, 0, 1, 1], [], []>} : vector<8x64xf32>, vector<64x64xf32>, vector<8x64xf32> -> vector<8x64xf32>
    %c0_9 = arith.constant 0 : index
    %c0_10 = arith.constant 0 : index
    %10 = vector.load %arg5[%c0_9, %c0_10] : memref<1x64xf32, #tpu.memory_space<vmem>>, vector<1x64xf32>
    %11 = vector.broadcast %10 : vector<1x64xf32> to vector<8x64xf32>
    %12 = arith.addf %9, %11 : vector<8x64xf32>
    %cst_11 = arith.constant 0.000000e+00 : f32
    %13 = vector.broadcast %cst_11 : f32 to vector<8x64xf32>
    %14 = arith.maximumf %12, %13 : vector<8x64xf32>
    %c0_12 = arith.constant 0 : index
    %c0_13 = arith.constant 0 : index
    %15 = vector.load %arg6[%c0_12, %c0_13] : memref<64x64xf32, #tpu.memory_space<vmem>>, vector<64x64xf32>
    %cst_14 = arith.constant dense<0.000000e+00> : vector<8x64xf32>
    %16 = tpu.matmul %14, %15, %cst_14 {dimension_numbers = #tpu.dot_dimension_numbers<[1], [0], [0], [1], [0, 0, 1, 1], [], []>} : vector<8x64xf32>, vector<64x64xf32>, vector<8x64xf32> -> vector<8x64xf32>
    %c0_15 = arith.constant 0 : index
    %c0_16 = arith.constant 0 : index
    %17 = vector.load %arg7[%c0_15, %c0_16] : memref<1x64xf32, #tpu.memory_space<vmem>>, vector<1x64xf32>
    %18 = vector.broadcast %17 : vector<1x64xf32> to vector<8x64xf32>
    %19 = arith.addf %16, %18 : vector<8x64xf32>
    %cst_17 = arith.constant 0.000000e+00 : f32
    %20 = vector.broadcast %cst_17 : f32 to vector<8x64xf32>
    %21 = arith.maximumf %19, %20 : vector<8x64xf32>
    %c0_18 = arith.constant 0 : index
    %c0_19 = arith.constant 0 : index
    %22 = vector.load %arg8[%c0_18, %c0_19] : memref<64x7xf32, #tpu.memory_space<vmem>>, vector<64x7xf32>
    %cst_20 = arith.constant dense<0.000000e+00> : vector<8x7xf32>
    %23 = tpu.matmul %21, %22, %cst_20 {dimension_numbers = #tpu.dot_dimension_numbers<[1], [0], [0], [1], [0, 0, 1, 1], [], []>} : vector<8x64xf32>, vector<64x7xf32>, vector<8x7xf32> -> vector<8x7xf32>
    %c0_21 = arith.constant 0 : index
    %c0_22 = arith.constant 0 : index
    %24 = vector.load %arg9[%c0_21, %c0_22] : memref<1x7xf32, #tpu.memory_space<vmem>>, vector<1x7xf32>
    %25 = vector.broadcast %24 : vector<1x7xf32> to vector<8x7xf32>
    %26 = arith.addf %23, %25 : vector<8x7xf32>
    %c0_23 = arith.constant 0 : index
    %c0_24 = arith.constant 0 : index
    %27 = vector.load %arg10[%c0_23, %c0_24] : memref<8x7xf32, #tpu.memory_space<vmem>>, vector<8x7xf32>
    tpu.vector_store %arg10[%c0_23, %c0_24], %26 {strides = array<i32>} : memref<8x7xf32, #tpu.memory_space<vmem>>, vector<8x7xf32>,
    return
  }
  func.func @transform_0(%arg0: i32) -> (i32, i32) {
    %c0_i32 = arith.constant 0 : i32
    %c0_i32_0 = arith.constant 0 : i32
    return %arg0, %c0_i32 : i32, i32
  }
  func.func @transform_1(%arg0: i32) -> (i32, i32) {
    %c0_i32 = arith.constant 0 : i32
    %c0_i32_0 = arith.constant 0 : i32
    %c0_i32_1 = arith.constant 0 : i32
    return %c0_i32, %c0_i32_0 : i32, i32
  }
  func.func @transform_2(%arg0: i32) -> (i32, i32) {
    %c0_i32 = arith.constant 0 : i32
    %c0_i32_0 = arith.constant 0 : i32
    %c0_i32_1 = arith.constant 0 : i32
    return %c0_i32, %c0_i32_0 : i32, i32
  }
  func.func @transform_3(%arg0: i32) -> (i32, i32) {
    %c0_i32 = arith.constant 0 : i32
    %c0_i32_0 = arith.constant 0 : i32
    %c0_i32_1 = arith.constant 0 : i32
    return %c0_i32, %c0_i32_0 : i32, i32
  }
  func.func @transform_4(%arg0: i32) -> (i32, i32) {
    %c0_i32 = arith.constant 0 : i32
    %c0_i32_0 = arith.constant 0 : i32
    %c0_i32_1 = arith.constant 0 : i32
    return %c0_i32, %c0_i32_0 : i32, i32
  }
  func.func @transform_5(%arg0: i32) -> (i32, i32) {
    %c0_i32 = arith.constant 0 : i32
    %c0_i32_0 = arith.constant 0 : i32
    %c0_i32_1 = arith.constant 0 : i32
    return %c0_i32, %c0_i32_0 : i32, i32
  }
  func.func @transform_6(%arg0: i32) -> (i32, i32) {
    %c0_i32 = arith.constant 0 : i32
    %c0_i32_0 = arith.constant 0 : i32
    %c0_i32_1 = arith.constant 0 : i32
    return %c0_i32, %c0_i32_0 : i32, i32
  }
  func.func @transform_7(%arg0: i32) -> (i32, i32) {
    %c0_i32 = arith.constant 0 : i32
    %c0_i32_0 = arith.constant 0 : i32
    %c0_i32_1 = arith.constant 0 : i32
    return %c0_i32, %c0_i32_0 : i32, i32
  }
  func.func @transform_8(%arg0: i32) -> (i32, i32) {
    %c0_i32 = arith.constant 0 : i32
    %c0_i32_0 = arith.constant 0 : i32
    %c0_i32_1 = arith.constant 0 : i32
    return %c0_i32, %c0_i32_0 : i32, i32
  }
  func.func @transform_9(%arg0: i32) -> (i32, i32) {
    %c0_i32 = arith.constant 0 : i32
    %c0_i32_0 = arith.constant 0 : i32
    return %arg0, %c0_i32 : i32, i32
  }
}

</mosaic_0001>

<llo_original>
// kernel: tpu_custom_call.1
$region0: #{tpu_custom_call.1}
  #allocation0 [shape = 'u32[]', space=smem, size = 0x4, offset = 0x4, fixed_abs, tag = 'smem constant byte address 0x4 - core index']
  #allocation1 [shape = 'u32[144,128]{1,0:T(1,128)}', space=vmem, size = 0x12000, scoped, tag = 'internal scratch']
  %s0 = inlined_call_operand.hbm [shape: f32[8,16], index: 0, kind: input, shape index: {}]
  %s1 = inlined_call_operand.vmem [shape: f32[16,64], index: 1, kind: input, shape index: {}]
  %s2 = inlined_call_operand.vmem [shape: f32[1,64], index: 2, kind: input, shape index: {}]
  %s3 = inlined_call_operand.vmem [shape: f32[64,64], index: 3, kind: input, shape index: {}]
  %s4 = inlined_call_operand.vmem [shape: f32[1,64], index: 4, kind: input, shape index: {}]
  %s5 = inlined_call_operand.hbm [shape: f32[64,64], index: 5, kind: input, shape index: {}]
  %s6 = inlined_call_operand.vmem [shape: f32[1,64], index: 6, kind: input, shape index: {}]
  %s7 = inlined_call_operand.vmem [shape: f32[64,7], index: 7, kind: input, shape index: {}]
  %s8 = inlined_call_operand.vmem [shape: f32[1,7], index: 8, kind: input, shape index: {}]
  %s9 = inlined_call_operand.hbm [shape: f32[8,7], index: 9, kind: output, shape index: {}]
  %s10 = sld [smem:[#allocation0]]
  $region54: #{tpu_custom_call.1} parent=0
    _
  %s12 = ssub.s32 1, %s10
  %s13 = scalar_select 0, %s12, %s10
  $region1: #{tpu_custom_call.1} parent=0
    #allocation2 [shape = 'u8[4096]{0}', space=vmem, size = 0x1000, scoped, tag = 'input window, operand 0, single buffered']
    #allocation3 [shape = 's32[1]{0}', space=sflag, size = 0x4, scoped, tag = 'scoped memory for tpu_custom_call.1']
    #allocation4 [shape = 's32[1]{0}', space=sflag, size = 0x4, scoped, tag = 'scoped memory for tpu_custom_call.1']
    #allocation5 [shape = 'u8[32768]{0}', space=vmem, size = 0x8000, scoped, tag = 'input window, operand 5, single buffered']
    #allocation6 [shape = 's32[1]{0}', space=sflag, size = 0x4, scoped, tag = 'scoped memory for tpu_custom_call.1']
    #allocation7 [shape = 'u8[4096]{0}', space=vmem, size = 0x1000, scoped, tag = 'output window, operand 0, single buffered']
    %14 = vsyncpa [#allocation3], 0
    %15 = vsyncpa [#allocation6], 0
    %16 = vsyncpa [#allocation4], 0
    // Predicated region
    $region2: #{tpu_custom_call.1} parent=1 // pred_check
      _
    $region3: #{tpu_custom_call.1} parent=1 // pred_check_branch
      %18 = sbr.rel (0) target = $region5
    $region4: #{tpu_custom_call.1} parent=1 // pred_region
      %s20 = ssub.s32 128, 128
      %21 = vsyncadd [#allocation3], %s20
      %s23 = sshll.u32 [#allocation2], 4
      %s24 = int_to_ptr.vmem [resolvable:$true] %s23
      %26 = dma.hbm_to_vmem [thread:$0]  %s0, 128, %s24, [#allocation3]
    $region5: #{tpu_custom_call.1} parent=1 // pred_fallthru
      _
    // Predicated region
    $region6: #{tpu_custom_call.1} parent=1 // pred_check
      _
    $region7: #{tpu_custom_call.1} parent=1 // pred_check_branch
      %28 = sbr.rel (0) target = $region9
    $region8: #{tpu_custom_call.1} parent=1 // pred_region
      _
    $region9: #{tpu_custom_call.1} parent=1 // pred_fallthru
      _
    // Predicated region
    $region10: #{tpu_custom_call.1} parent=1 // pred_check
      _
    $region11: #{tpu_custom_call.1} parent=1 // pred_check_branch
      %30 = sbr.rel (0) target = $region13
    $region12: #{tpu_custom_call.1} parent=1 // pred_region
      _
    $region13: #{tpu_custom_call.1} parent=1 // pred_fallthru
      _
    // Predicated region
    $region14: #{tpu_custom_call.1} parent=1 // pred_check
      _
    $region15: #{tpu_custom_call.1} parent=1 // pred_check_branch
      %32 = sbr.rel (0) target = $region17
    $region16: #{tpu_custom_call.1} parent=1 // pred_region
      _
    $region17: #{tpu_custom_call.1} parent=1 // pred_fallthru
      _
    // Predicated region
    $region18: #{tpu_custom_call.1} parent=1 // pred_check
      _
    $region19: #{tpu_custom_call.1} parent=1 // pred_check_branch
      %34 = sbr.rel (0) target = $region21
    $region20: #{tpu_custom_call.1} parent=1 // pred_region
      _
    $region21: #{tpu_custom_call.1} parent=1 // pred_fallthru
      _
    // Predicated region
    $region22: #{tpu_custom_call.1} parent=1 // pred_check
      _
    $region23: #{tpu_custom_call.1} parent=1 // pred_check_branch
      %36 = sbr.rel (0) target = $region25
    $region24: #{tpu_custom_call.1} parent=1 // pred_region
      %s38 = ssub.s32 1024, 1024
      %39 = vsyncadd [#allocation6], %s38
      %s40 = sshll.u32 [#allocation5], 4
      %s41 = int_to_ptr.vmem [resolvable:$true] %s40
      %46 = dma.hbm_to_vmem [thread:$0]  %s5, 1024, %s41, [#allocation6], 128, 128, 8
    $region25: #{tpu_custom_call.1} parent=1 // pred_fallthru
      _
    // Predicated region
    $region26: #{tpu_custom_call.1} parent=1 // pred_check
      _
    $region27: #{tpu_custom_call.1} parent=1 // pred_check_branch
      %48 = sbr.rel (0) target = $region29
    $region28: #{tpu_custom_call.1} parent=1 // pred_region
      _
    $region29: #{tpu_custom_call.1} parent=1 // pred_fallthru
      _
    // Predicated region
    $region30: #{tpu_custom_call.1} parent=1 // pred_check
      _
    $region31: #{tpu_custom_call.1} parent=1 // pred_check_branch
      %50 = sbr.rel (0) target = $region33
    $region32: #{tpu_custom_call.1} parent=1 // pred_region
      _
    $region33: #{tpu_custom_call.1} parent=1 // pred_fallthru
      _
    // Predicated region
    $region34: #{tpu_custom_call.1} parent=1 // pred_check
      _
    $region35: #{tpu_custom_call.1} parent=1 // pred_check_branch
      %52 = sbr.rel (0) target = $region37
    $region36: #{tpu_custom_call.1} parent=1 // pred_region
      _
    $region37: #{tpu_custom_call.1} parent=1 // pred_fallthru
      _
    // Predicated region
    $region38: #{tpu_custom_call.1} parent=1 // pred_check
      _
    $region39: #{tpu_custom_call.1} parent=1 // pred_check_branch
      %54 = sbr.rel (0) target = $region41
    $region40: #{tpu_custom_call.1} parent=1 // pred_region
      %55 = dma.done [#allocation3], 128
    $region41: #{tpu_custom_call.1} parent=1 // pred_fallthru
      _
    // Predicated region
    $region42: #{tpu_custom_call.1} parent=1 // pred_check
      _
    $region43: #{tpu_custom_call.1} parent=1 // pred_check_branch
      %57 = sbr.rel (0) target = $region45
    $region44: #{tpu_custom_call.1} parent=1 // pred_region
      %58 = dma.done [#allocation6], 1024
    $region45: #{tpu_custom_call.1} parent=1 // pred_fallthru
      _
    %v59 = vld [vmem:[#allocation2] sm:$0xff]
    %v60 = vld [vmem:[%s1] sm:$0xff]
    %v61 = vld [vmem:[%s1 + $0x8] sm:$0xff]
    %v62 = vld [vmem:[%s2] sm:$0x1]
    %v64 = vlaneseq
    %v65 = vshrl.u32 %v64, 7
    %v66 = vsub.s32 0, %v65
    %v67 = vrot.slane %v62, %v66
    %vm69 = vcmask 130048
    %v71 = vsel %vm69, %v59, 0
    %73 = vmatprep.subr.mxu0 0.0
    %74 = vmatpush1.msra.mxu0 %v60
    %75 = vmatprep.subr.mxu0 0.0
    %76 = vmatpush1.msra.mxu0 %v61
    %77 = vmatprep.subr.mxu0 0.0
    %78 = vmatpush1.msra.mxu0 0.0
    %79 = vmatprep.subr.mxu0 0.0
    %80 = vmatpush1.msra.mxu0 0.0
    %81 = vmatprep.subr.mxu0 0.0
    %82 = vmatpush1.msra.mxu0 0.0
    %83 = vmatprep.subr.mxu0 0.0
    %84 = vmatpush1.msra.mxu0 0.0
    %85 = vmatprep.subr.mxu0 0.0
    %86 = vmatpush1.msra.mxu0 0.0
    %87 = vmatprep.subr.mxu0 0.0
    %88 = vmatpush1.msra.mxu0 0.0
    %89 = vmatprep.subr.mxu0 0.0
    %90 = vmatpush1.msra.mxu0 0.0
    %91 = vmatprep.subr.mxu0 0.0
    %92 = vmatpush1.msra.mxu0 0.0
    %93 = vmatprep.subr.mxu0 0.0
    %94 = vmatpush1.msra.mxu0 0.0
    %95 = vmatprep.subr.mxu0 0.0
    %96 = vmatpush1.msra.mxu0 0.0
    %97 = vmatprep.subr.mxu0 0.0
    %98 = vmatpush1.msra.mxu0 0.0
    %99 = vmatprep.subr.mxu0 0.0
    %100 = vmatpush1.msra.mxu0 0.0
    %101 = vmatprep.subr.mxu0 0.0
    %102 = vmatpush1.msra.mxu0 0.0
    %103 = vmatprep.subr.mxu0 0.0
    %104 = vmatpush1.msra.mxu0 0.0
    %105 = vmatprep.subr.mxu0 0.0
    %106 = vmatpush1.msra.mxu0 0.0
    %107 = vmatprep.subr.mxu0 0.0
    %108 = vmatpush1.msra.mxu0 0.0
    %109 = vmatprep.subr.mxu0 0.0
    %110 = vmatpush1.msra.mxu0 0.0
    %111 = vmatprep.subr.mxu0 0.0
    %112 = vmatpush1.msra.mxu0 0.0
    %113 = vmatprep.subr.mxu0 0.0
    %114 = vmatpush1.msra.mxu0 0.0
    %115 = vmatprep.subr.mxu0 0.0
    %116 = vmatpush1.msra.mxu0 0.0
    %117 = vmatprep.subr.mxu0 0.0
    %118 = vmatpush1.msra.mxu0 0.0
    %119 = vmatprep.subr.mxu0 0.0
    %120 = vmatpush1.msra.mxu0 0.0
    %121 = vmatprep.subr.mxu0 0.0
    %122 = vmatpush1.msra.mxu0 0.0
    %123 = vmatprep.subr.mxu0 0.0
    %124 = vmatpush1.msra.mxu0 0.0
    %125 = vmatprep.subr.mxu0 0.0
    %126 = vmatpush1.msra.mxu0 0.0
    %127 = vmatprep.subr.mxu0 0.0
    %128 = vmatpush1.msra.mxu0 0.0
    %129 = vmatprep.subr.mxu0 0.0
    %130 = vmatpush1.msra.mxu0 0.0
    %131 = vmatprep.subr.mxu0 0.0
    %132 = vmatpush1.msra.mxu0 0.0
    %133 = vmatprep.subr.mxu0 0.0
    %134 = vmatpush1.msra.mxu0 0.0
    %135 = vmatprep.subr.mxu0 0.0
    %136 = vmatpush1.msra.mxu0 0.0
    %137 = vmatprep.mubr.f32.mxu0 0.0
    %138 = vmatmul.mubr.f32.gmra.mrb[0].mxu0 %v71
    %v139 = vpop.f32.mrb[0].mxu0
    %v140 = vadd.f32 %v67, %v139
    %v141 = vpop.f32.mrb[0].mxu0
    %142 = vdwg.mxu0
    %v143 = vmax.f32 %v140, 0.0
    %v144 = vld [vmem:[%s3] sm:$0xff]
    %v145 = vld [vmem:[%s3 + $0x8] sm:$0xff]
    %v146 = vld [vmem:[%s3 + $0x10] sm:$0xff]
    %v147 = vld [vmem:[%s3 + $0x18] sm:$0xff]
    %v148 = vld [vmem:[%s3 + $0x20] sm:$0xff]
    %v149 = vld [vmem:[%s3 + $0x28] sm:$0xff]
    %v150 = vld [vmem:[%s3 + $0x30] sm:$0xff]
    %v151 = vld [vmem:[%s3 + $0x38] sm:$0xff]
    %v152 = vld [vmem:[%s4] sm:$0x1]
    %v154 = vlaneseq
    %v155 = vshrl.u32 %v154, 7
    %v156 = vsub.s32 0, %v155
    %v157 = vrot.slane %v152, %v156
    %vm159 = vcmask 523264
    %v161 = vsel %vm159, %v143, 0
    %163 = vmatprep.subr.mxu0 0.0
    %164 = vmatpush1.msra.mxu0 %v144
    %165 = vmatprep.subr.mxu0 0.0
    %166 = vmatpush1.msra.mxu0 %v145
    %167 = vmatprep.subr.mxu0 0.0
    %168 = vmatpush1.msra.mxu0 %v146
    %169 = vmatprep.subr.mxu0 0.0
    %170 = vmatpush1.msra.mxu0 %v147
    %171 = vmatprep.subr.mxu0 0.0
    %172 = vmatpush1.msra.mxu0 %v148
    %173 = vmatprep.subr.mxu0 0.0
    %174 = vmatpush1.msra.mxu0 %v149
    %175 = vmatprep.subr.mxu0 0.0
    %176 = vmatpush1.msra.mxu0 %v150
    %177 = vmatprep.subr.mxu0 0.0
    %178 = vmatpush1.msra.mxu0 %v151
    %179 = vmatprep.subr.mxu0 0.0
    %180 = vmatpush1.msra.mxu0 0.0
    %181 = vmatprep.subr.mxu0 0.0
    %182 = vmatpush1.msra.mxu0 0.0
    %183 = vmatprep.subr.mxu0 0.0
    %184 = vmatpush1.msra.mxu0 0.0
    %185 = vmatprep.subr.mxu0 0.0
    %186 = vmatpush1.msra.mxu0 0.0
    %187 = vmatprep.subr.mxu0 0.0
    %188 = vmatpush1.msra.mxu0 0.0
    %189 = vmatprep.subr.mxu0 0.0
    %190 = vmatpush1.msra.mxu0 0.0
    %191 = vmatprep.subr.mxu0 0.0
    %192 = vmatpush1.msra.mxu0 0.0
    %193 = vmatprep.subr.mxu0 0.0
    %194 = vmatpush1.msra.mxu0 0.0
    %195 = vmatprep.subr.mxu0 0.0
    %196 = vmatpush1.msra.mxu0 0.0
    %197 = vmatprep.subr.mxu0 0.0
    %198 = vmatpush1.msra.mxu0 0.0
    %199 = vmatprep.subr.mxu0 0.0
    %200 = vmatpush1.msra.mxu0 0.0
    %201 = vmatprep.subr.mxu0 0.0
    %202 = vmatpush1.msra.mxu0 0.0
    %203 = vmatprep.subr.mxu0 0.0
    %204 = vmatpush1.msra.mxu0 0.0
    %205 = vmatprep.subr.mxu0 0.0
    %206 = vmatpush1.msra.mxu0 0.0
    %207 = vmatprep.subr.mxu0 0.0
    %208 = vmatpush1.msra.mxu0 0.0
    %209 = vmatprep.subr.mxu0 0.0
    %210 = vmatpush1.msra.mxu0 0.0
    %211 = vmatprep.subr.mxu0 0.0
    %212 = vmatpush1.msra.mxu0 0.0
    %213 = vmatprep.subr.mxu0 0.0
    %214 = vmatpush1.msra.mxu0 0.0
    %215 = vmatprep.subr.mxu0 0.0
    %216 = vmatpush1.msra.mxu0 0.0
    %217 = vmatprep.subr.mxu0 0.0
    %218 = vmatpush1.msra.mxu0 0.0
    %219 = vmatprep.subr.mxu0 0.0
    %220 = vmatpush1.msra.mxu0 0.0
    %221 = vmatprep.subr.mxu0 0.0
    %222 = vmatpush1.msra.mxu0 0.0
    %223 = vmatprep.subr.mxu0 0.0
    %224 = vmatpush1.msra.mxu0 0.0
    %225 = vmatprep.subr.mxu0 0.0
    %226 = vmatpush1.msra.mxu0 0.0
    %227 = vmatprep.mubr.f32.mxu0 0.0
    %228 = vmatmul.mubr.f32.gmra.mrb[0].mxu0 %v161
    %v229 = vpop.f32.mrb[0].mxu0
    %v230 = vadd.f32 %v157, %v229
    %v231 = vpop.f32.mrb[0].mxu0
    %232 = vdwg.mxu0
    %v233 = vmax.f32 %v230, 0.0
    %v234 = vld [vmem:[#allocation5] sm:$0xff]
    %v235 = vld [vmem:[#allocation5 + $0x8] sm:$0xff]
    %v236 = vld [vmem:[#allocation5 + $0x10] sm:$0xff]
    %v237 = vld [vmem:[#allocation5 + $0x18] sm:$0xff]
    %v238 = vld [vmem:[#allocation5 + $0x20] sm:$0xff]
    %v239 = vld [vmem:[#allocation5 + $0x28] sm:$0xff]
    %v240 = vld [vmem:[#allocation5 + $0x30] sm:$0xff]
    %v241 = vld [vmem:[#allocation5 + $0x38] sm:$0xff]
    %v242 = vld [vmem:[%s6] sm:$0x1]
    %v244 = vlaneseq
    %v245 = vshrl.u32 %v244, 7
    %v246 = vsub.s32 0, %v245
    %v247 = vrot.slane %v242, %v246
    %v250 = vsel %vm159, %v233, 0
    %252 = vmatprep.subr.mxu0 0.0
    %253 = vmatpush1.msra.mxu0 %v234
    %254 = vmatprep.subr.mxu0 0.0
    %255 = vmatpush1.msra.mxu0 %v235
    %256 = vmatprep.subr.mxu0 0.0
    %257 = vmatpush1.msra.mxu0 %v236
    %258 = vmatprep.subr.mxu0 0.0
    %259 = vmatpush1.msra.mxu0 %v237
    %260 = vmatprep.subr.mxu0 0.0
    %261 = vmatpush1.msra.mxu0 %v238
    %262 = vmatprep.subr.mxu0 0.0
    %263 = vmatpush1.msra.mxu0 %v239
    %264 = vmatprep.subr.mxu0 0.0
    %265 = vmatpush1.msra.mxu0 %v240
    %266 = vmatprep.subr.mxu0 0.0
    %267 = vmatpush1.msra.mxu0 %v241
    %268 = vmatprep.subr.mxu0 0.0
    %269 = vmatpush1.msra.mxu0 0.0
    %270 = vmatprep.subr.mxu0 0.0
    %271 = vmatpush1.msra.mxu0 0.0
    %272 = vmatprep.subr.mxu0 0.0
    %273 = vmatpush1.msra.mxu0 0.0
    %274 = vmatprep.subr.mxu0 0.0
    %275 = vmatpush1.msra.mxu0 0.0
    %276 = vmatprep.subr.mxu0 0.0
    %277 = vmatpush1.msra.mxu0 0.0
    %278 = vmatprep.subr.mxu0 0.0
    %279 = vmatpush1.msra.mxu0 0.0
    %280 = vmatprep.subr.mxu0 0.0
    %281 = vmatpush1.msra.mxu0 0.0
    %282 = vmatprep.subr.mxu0 0.0
    %283 = vmatpush1.msra.mxu0 0.0
    %284 = vmatprep.subr.mxu0 0.0
    %285 = vmatpush1.msra.mxu0 0.0
    %286 = vmatprep.subr.mxu0 0.0
    %287 = vmatpush1.msra.mxu0 0.0
    %288 = vmatprep.subr.mxu0 0.0
    %289 = vmatpush1.msra.mxu0 0.0
    %290 = vmatprep.subr.mxu0 0.0
    %291 = vmatpush1.msra.mxu0 0.0
    %292 = vmatprep.subr.mxu0 0.0
    %293 = vmatpush1.msra.mxu0 0.0
    %294 = vmatprep.subr.mxu0 0.0
    %295 = vmatpush1.msra.mxu0 0.0
    %296 = vmatprep.subr.mxu0 0.0
    %297 = vmatpush1.msra.mxu0 0.0
    %298 = vmatprep.subr.mxu0 0.0
    %299 = vmatpush1.msra.mxu0 0.0
    %300 = vmatprep.subr.mxu0 0.0
    %301 = vmatpush1.msra.mxu0 0.0
    %302 = vmatprep.subr.mxu0 0.0
    %303 = vmatpush1.msra.mxu0 0.0
    %304 = vmatprep.subr.mxu0 0.0
    %305 = vmatpush1.msra.mxu0 0.0
    %306 = vmatprep.subr.mxu0 0.0
    %307 = vmatpush1.msra.mxu0 0.0
    %308 = vmatprep.subr.mxu0 0.0
    %309 = vmatpush1.msra.mxu0 0.0
    %310 = vmatprep.subr.mxu0 0.0
    %311 = vmatpush1.msra.mxu0 0.0
    %312 = vmatprep.subr.mxu0 0.0
    %313 = vmatpush1.msra.mxu0 0.0
    %314 = vmatprep.subr.mxu0 0.0
    %315 = vmatpush1.msra.mxu0 0.0
    %316 = vmatprep.mubr.f32.mxu0 0.0
    %317 = vmatmul.mubr.f32.gmra.mrb[0].mxu0 %v250
    %v318 = vpop.f32.mrb[0].mxu0
    %v319 = vadd.f32 %v247, %v318
    %v320 = vpop.f32.mrb[0].mxu0
    %321 = vdwg.mxu0
    %v322 = vmax.f32 %v319, 0.0
    %v323 = vld [vmem:[%s7] sm:$0xff]
    %v324 = vld [vmem:[%s7 + $0x8] sm:$0xff]
    %v325 = vld [vmem:[%s7 + $0x10] sm:$0xff]
    %v326 = vld [vmem:[%s7 + $0x18] sm:$0xff]
    %v327 = vld [vmem:[%s7 + $0x20] sm:$0xff]
    %v328 = vld [vmem:[%s7 + $0x28] sm:$0xff]
    %v329 = vld [vmem:[%s7 + $0x30] sm:$0xff]
    %v330 = vld [vmem:[%s7 + $0x38] sm:$0xff]
    %v331 = vld [vmem:[%s8] sm:$0x1]
    %v333 = vlaneseq
    %v334 = vshrl.u32 %v333, 7
    %v335 = vsub.s32 0, %v334
    %v336 = vrot.slane %v331, %v335
    %v339 = vsel %vm159, %v322, 0
    %341 = vmatprep.subr.mxu0 0.0
    %342 = vmatpush1.msra.mxu0 %v323
    %343 = vmatprep.subr.mxu0 0.0
    %344 = vmatpush1.msra.mxu0 %v324
    %345 = vmatprep.subr.mxu0 0.0
    %346 = vmatpush1.msra.mxu0 %v325
    %347 = vmatprep.subr.mxu0 0.0
    %348 = vmatpush1.msra.mxu0 %v326
    %349 = vmatprep.subr.mxu0 0.0
    %350 = vmatpush1.msra.mxu0 %v327
    %351 = vmatprep.subr.mxu0 0.0
    %352 = vmatpush1.msra.mxu0 %v328
    %353 = vmatprep.subr.mxu0 0.0
    %354 = vmatpush1.msra.mxu0 %v329
    %355 = vmatprep.subr.mxu0 0.0
    %356 = vmatpush1.msra.mxu0 %v330
    %357 = vmatprep.subr.mxu0 0.0
    %358 = vmatpush1.msra.mxu0 0.0
    %359 = vmatprep.subr.mxu0 0.0
    %360 = vmatpush1.msra.mxu0 0.0
    %361 = vmatprep.subr.mxu0 0.0
    %362 = vmatpush1.msra.mxu0 0.0
    %363 = vmatprep.subr.mxu0 0.0
    %364 = vmatpush1.msra.mxu0 0.0
    %365 = vmatprep.subr.mxu0 0.0
    %366 = vmatpush1.msra.mxu0 0.0
    %367 = vmatprep.subr.mxu0 0.0
    %368 = vmatpush1.msra.mxu0 0.0
    %369 = vmatprep.subr.mxu0 0.0
    %370 = vmatpush1.msra.mxu0 0.0
    %371 = vmatprep.subr.mxu0 0.0
    %372 = vmatpush1.msra.mxu0 0.0
    %373 = vmatprep.subr.mxu0 0.0
    %374 = vmatpush1.msra.mxu0 0.0
    %375 = vmatprep.subr.mxu0 0.0
    %376 = vmatpush1.msra.mxu0 0.0
    %377 = vmatprep.subr.mxu0 0.0
    %378 = vmatpush1.msra.mxu0 0.0
    %379 = vmatprep.subr.mxu0 0.0
    %380 = vmatpush1.msra.mxu0 0.0
    %381 = vmatprep.subr.mxu0 0.0
    %382 = vmatpush1.msra.mxu0 0.0
    %383 = vmatprep.subr.mxu0 0.0
    %384 = vmatpush1.msra.mxu0 0.0
    %385 = vmatprep.subr.mxu0 0.0
    %386 = vmatpush1.msra.mxu0 0.0
    %387 = vmatprep.subr.mxu0 0.0
    %388 = vmatpush1.msra.mxu0 0.0
    %389 = vmatprep.subr.mxu0 0.0
    %390 = vmatpush1.msra.mxu0 0.0
    %391 = vmatprep.subr.mxu0 0.0
    %392 = vmatpush1.msra.mxu0 0.0
    %393 = vmatprep.subr.mxu0 0.0
    %394 = vmatpush1.msra.mxu0 0.0
    %395 = vmatprep.subr.mxu0 0.0
    %396 = vmatpush1.msra.mxu0 0.0
    %397 = vmatprep.subr.mxu0 0.0
    %398 = vmatpush1.msra.mxu0 0.0
    %399 = vmatprep.subr.mxu0 0.0
    %400 = vmatpush1.msra.mxu0 0.0
    %401 = vmatprep.subr.mxu0 0.0
    %402 = vmatpush1.msra.mxu0 0.0
    %403 = vmatprep.subr.mxu0 0.0
    %404 = vmatpush1.msra.mxu0 0.0
    %405 = vmatprep.mubr.f32.mxu0 0.0
    %406 = vmatmul.mubr.f32.gmra.mrb[0].mxu0 %v339
    %v407 = vpop.f32.mrb[0].mxu0
    %v408 = vadd.f32 %v336, %v407
    %v409 = vpop.f32.mrb[0].mxu0
    %410 = vdwg.mxu0
    %vm411 = vcmask 56320
    %412 = vst.msk [vmem:[#allocation7] sm:$0xff] %vm411, %v408
    // Predicated region
    $region46: #{tpu_custom_call.1} parent=1 // pred_check
      _
    $region47: #{tpu_custom_call.1} parent=1 // pred_check_branch
      %414 = sbr.rel (0) target = $region49
    $region48: #{tpu_custom_call.1} parent=1 // pred_region
      %s416 = ssub.s32 128, 128
      %417 = vsyncadd [#allocation4], %s416
      %s419 = sshll.u32 [#allocation7], 4
      %s420 = int_to_ptr.vmem [resolvable:$true] %s419
      %422 = dma.vmem_to_hbm [thread:$0]  %s420, 128, %s9, [#allocation4]
    $region49: #{tpu_custom_call.1} parent=1 // pred_fallthru
      _
    // Predicated region
    $region50: #{tpu_custom_call.1} parent=1 // pred_check
      _
    $region51: #{tpu_custom_call.1} parent=1 // pred_check_branch
      %424 = sbr.rel (0) target = $region53
    $region52: #{tpu_custom_call.1} parent=1 // pred_region
      %425 = dma.done [#allocation4], 128
    $region53: #{tpu_custom_call.1} parent=1 // pred_fallthru
      _
    %426 = vsyncpa [#allocation3], 1
    %427 = vsyncpa [#allocation6], 1
    %428 = vsyncpa [#allocation4], 1

</llo_original>
